<compile_context>
chip_gen: v7x
topology: tpu7x:2x2x1
jax: 0.10.0
libtpu: 0.0.40
codegen_flags: <defaults>
</compile_context>

<pallas_src>
import functools

import jax
import jax.numpy as jnp
from jax.experimental import pallas as pl
from jax.experimental.pallas import tpu as pltpu


def _round_up(x, m):
    return (x + m - 1) // m * m


def _la_mixed_kernel(x_ref, w_ref, b_ref, a_ref, o_ref, *, num_ops, hp):
    """o = sum_k alpha[k] * relu(x @ W[k] + b[k]) for one node tile.

    All K candidate heads are fused into a single MXU matmul:
      y = x @ W_cat                      # (tm, K*HP), one dot
      y = relu(y + b_cat) * alpha_vec    # one VPU pass
      o = sum over the K lane-groups     # vreg-aligned static slices
    """
    x = x_ref[...]
    y = jnp.dot(x, w_ref[...], preferred_element_type=jnp.float32)
    y = jnp.maximum(y + b_ref[...], 0.0) * a_ref[...]
    acc = y[:, :hp]
    for kk in range(1, num_ops):                  # static, tiny K: unrolled
        acc = acc + y[:, kk * hp:(kk + 1) * hp]
    o_ref[...] = acc.astype(o_ref.dtype)


def _pick_node_tile(n, d, hp, khp, block_nodes):
    """Node tile from a ~6 MiB VMEM working-set budget, multiple of 8."""
    if block_nodes is not None:
        cap = max(int(block_nodes), 8)
    else:
        # tm-dependent VMEM per row: 2x x-tile + 2x out-tile + y + acc (f32).
        per_row = 4 * (2 * d + 3 * hp + khp)
        cap = (6 * 1024 * 1024) // per_row
        cap = max(128, min(cap, 2048))
    tm = min(cap, n)
    if tm >= n:
        return n                    # full extent: no (8,128) divisibility constraint
    tm = max((tm // 8) * 8, 8)      # sublane multiple for f32
    return n if tm >= n else tm


@functools.partial(jax.jit, static_argnames=("block_nodes",))
def la_mixed_op(x, weights_k, biases_k, alphas, *, block_nodes=None):
    """x: (N, H), weights_k: (K, H, H) [in, out], biases_k: (K, H), alphas: (K,) -> (N, H)."""
    n, d = x.shape
    k, d2, h = weights_k.shape
    assert d == d2 and h == d and biases_k.shape == (k, h) and alphas.shape == (k,)

    # Lane-dense output: pad the output-feature dim to a multiple of 128 so
    # both the K*HP intermediate slices and the output stores are full-lane.
    hp = _round_up(h, 128)
    khp = k * hp
    if hp != h:
        w_p = jnp.pad(weights_k, ((0, 0), (0, 0), (0, hp - h)))
        b_p = jnp.pad(biases_k, ((0, 0), (0, hp - h)))
    else:
        w_p, b_p = weights_k, biases_k

    # Concatenate all candidate heads along the output-feature axis.
    w_cat = jnp.transpose(w_p, (1, 0, 2)).reshape(d, khp)               # (D, K*HP)
    b_cat = b_p.reshape(1, khp).astype(jnp.float32)                     # (1, K*HP)
    a_vec = jnp.repeat(alphas.astype(jnp.float32), hp).reshape(1, khp)  # (1, K*HP)

    tm = _pick_node_tile(n, d, hp, khp, block_nodes)
    grid = (pl.cdiv(n, tm),)

    # Mostly memory-bound: give XLA a scheduling hint.
    flops = 2 * n * d * khp + 3 * n * khp
    bytes_accessed = 4 * (n * d + d * khp + 2 * khp + n * hp)

    kernel = functools.partial(_la_mixed_kernel, num_ops=k, hp=hp)

    out_p = pl.pallas_call(
        kernel,
        out_shape=jax.ShapeDtypeStruct((n, hp), x.dtype),
        grid_spec=pltpu.PrefetchScalarGridSpec(
            num_scalar_prefetch=0,
            grid=grid,
            in_specs=[
                pl.BlockSpec((tm, d), lambda i: (i, 0)),     # node tile (pipelined)
                pl.BlockSpec((d, khp), lambda i: (0, 0)),    # fused weights, resident
                pl.BlockSpec((1, khp), lambda i: (0, 0)),    # fused biases, resident
                pl.BlockSpec((1, khp), lambda i: (0, 0)),    # alpha lane-vector, resident
            ],
            out_specs=pl.BlockSpec((tm, hp), lambda i: (i, 0)),
        ),
        compiler_params=pltpu.CompilerParams(
            dimension_semantics=("parallel",),
        ),
        cost_estimate=pl.CostEstimate(
            flops=flops, transcendentals=0, bytes_accessed=bytes_accessed),
    )(x, w_cat, b_cat, a_vec)

    return out_p if hp == h else out_p[:, :h]


if __name__ == "__main__":
    # Small, forward-implied shapes: 200 nodes, hidden_size 32, 3 candidate ops.
    num_nodes = 200          # not a tile multiple -> exercises ragged last tile
    hidden_size = 32
    num_ops = 3              # stand-in for len(LA_PRIMITIVES)

    key = jax.random.PRNGKey(0)
    k_x, k_w, k_b, k_a = jax.random.split(key, 4)

    x = jax.random.normal(k_x, (num_nodes, hidden_size), dtype=jnp.float32)

    # nn.Linear-style init range; weights stored pre-transposed as (in, out).
    bound = 1.0 / (hidden_size ** 0.5)
    weights_k = jax.random.uniform(
        k_w, (num_ops, hidden_size, hidden_size), dtype=jnp.float32,
        minval=-bound, maxval=bound)
    biases_k = jax.random.uniform(
        k_b, (num_ops, hidden_size), dtype=jnp.float32,
        minval=-bound, maxval=bound)
    # Architecture mixing weights (softmax over candidates, as in DARTS search).
    alphas = jax.nn.softmax(jax.random.normal(k_a, (num_ops,), dtype=jnp.float32))

    # Pure-JAX reference of the same math.
    ref = sum(alphas[i] * jax.nn.relu(x @ weights_k[i] + biases_k[i])
              for i in range(num_ops))

    # Default path (single full-extent node tile at this size).
    out = jax.block_until_ready(la_mixed_op(x, weights_k, biases_k, alphas))
    assert out.shape == (num_nodes, hidden_size)
    assert jnp.allclose(out, ref, atol=1e-4, rtol=1e-4)

    # Multi-step grid path (pipelined node tiles, ragged last tile).
    out_tiled = jax.block_until_ready(
        la_mixed_op(x, weights_k, biases_k, alphas, block_nodes=64))
    assert jnp.allclose(out_tiled, ref, atol=1e-4, rtol=1e-4)

    print("KERNEL_OK")
</pallas_src>

<mosaic_0001>
module attributes {stable_mosaic.version = 11 : i64} {
  func.func @_la_mixed_kernel(%arg0: i32, %arg1: memref<200x32xf32, #tpu.memory_space<vmem>>, %arg2: memref<32x384xf32, #tpu.memory_space<vmem>>, %arg3: memref<1x384xf32, #tpu.memory_space<vmem>>, %arg4: memref<1x384xf32, #tpu.memory_space<vmem>>, %arg5: memref<200x128xf32, #tpu.memory_space<vmem>>) attributes {dimension_semantics = [#tpu.dimension_semantics<parallel>], iteration_bounds = array<i64: 1>, scalar_prefetch = 0 : i64, scratch_operands = 0 : i64, tpu.core_type = #tpu.core_type<tc>, window_params = [{transform_indices = @transform_0, window_bounds = array<i64: 200, 32>}, {pipeline_mode = #tpu.pipeline_mode<synchronous>, transform_indices = @transform_1, window_bounds = array<i64: 32, 384>}, {pipeline_mode = #tpu.pipeline_mode<synchronous>, transform_indices = @transform_2, window_bounds = array<i64: 1, 384>}, {pipeline_mode = #tpu.pipeline_mode<synchronous>, transform_indices = @transform_3, window_bounds = array<i64: 1, 384>}, {transform_indices = @transform_4, window_bounds = array<i64: 200, 128>}]} {
    %c0 = arith.constant 0 : index
    %c0_0 = arith.constant 0 : index
    %0 = vector.load %arg1[%c0, %c0_0] : memref<200x32xf32, #tpu.memory_space<vmem>>, vector<200x32xf32>
    %c0_1 = arith.constant 0 : index
    %c0_2 = arith.constant 0 : index
    %1 = vector.load %arg2[%c0_1, %c0_2] : memref<32x384xf32, #tpu.memory_space<vmem>>, vector<32x384xf32>
    %cst = arith.constant dense<0.000000e+00> : vector<200x384xf32>
    %2 = tpu.matmul %0, %1, %cst {dimension_numbers = #tpu.dot_dimension_numbers<[1], [0], [0], [1], [0, 0, 1, 1], [], []>} : vector<200x32xf32>, vector<32x384xf32>, vector<200x384xf32> -> vector<200x384xf32>
    %c0_3 = arith.constant 0 : index
    %c0_4 = arith.constant 0 : index
    %3 = vector.load %arg3[%c0_3, %c0_4] : memref<1x384xf32, #tpu.memory_space<vmem>>, vector<1x384xf32>
    %4 = vector.broadcast %3 : vector<1x384xf32> to vector<200x384xf32>
    %5 = arith.addf %2, %4 : vector<200x384xf32>
    %cst_5 = arith.constant 0.000000e+00 : f32
    %6 = vector.broadcast %cst_5 : f32 to vector<200x384xf32>
    %7 = arith.maximumf %5, %6 : vector<200x384xf32>
    %c0_6 = arith.constant 0 : index
    %c0_7 = arith.constant 0 : index
    %8 = vector.load %arg4[%c0_6, %c0_7] : memref<1x384xf32, #tpu.memory_space<vmem>>, vector<1x384xf32>
    %9 = vector.broadcast %8 : vector<1x384xf32> to vector<200x384xf32>
    %10 = arith.mulf %7, %9 : vector<200x384xf32>
    %11 = vector.extract_strided_slice %10 {offsets = [0, 0], sizes = [200, 128], strides = [1, 1]} : vector<200x384xf32> to vector<200x128xf32>
    %12 = vector.extract_strided_slice %10 {offsets = [0, 128], sizes = [200, 128], strides = [1, 1]} : vector<200x384xf32> to vector<200x128xf32>
    %13 = arith.addf %11, %12 : vector<200x128xf32>
    %14 = vector.extract_strided_slice %10 {offsets = [0, 256], sizes = [200, 128], strides = [1, 1]} : vector<200x384xf32> to vector<200x128xf32>
    %15 = arith.addf %13, %14 : vector<200x128xf32>
    %c0_8 = arith.constant 0 : index
    %c0_9 = arith.constant 0 : index
    %16 = vector.load %arg5[%c0_8, %c0_9] : memref<200x128xf32, #tpu.memory_space<vmem>>, vector<200x128xf32>
    tpu.vector_store %arg5[%c0_8, %c0_9], %15 {strides = array<i32>} : memref<200x128xf32, #tpu.memory_space<vmem>>, vector<200x128xf32>,
    return
  }
  func.func @transform_0(%arg0: i32) -> (i32, i32) {
    %c0_i32 = arith.constant 0 : i32
    %c0_i32_0 = arith.constant 0 : i32
    return %arg0, %c0_i32 : i32, i32
  }
  func.func @transform_1(%arg0: i32) -> (i32, i32) {
    %c0_i32 = arith.constant 0 : i32
    %c0_i32_0 = arith.constant 0 : i32
    %c0_i32_1 = arith.constant 0 : i32
    return %c0_i32, %c0_i32_0 : i32, i32
  }
  func.func @transform_2(%arg0: i32) -> (i32, i32) {
    %c0_i32 = arith.constant 0 : i32
    %c0_i32_0 = arith.constant 0 : i32
    %c0_i32_1 = arith.constant 0 : i32
    return %c0_i32, %c0_i32_0 : i32, i32
  }
  func.func @transform_3(%arg0: i32) -> (i32, i32) {
    %c0_i32 = arith.constant 0 : i32
    %c0_i32_0 = arith.constant 0 : i32
    %c0_i32_1 = arith.constant 0 : i32
    return %c0_i32, %c0_i32_0 : i32, i32
  }
  func.func @transform_4(%arg0: i32) -> (i32, i32) {
    %c0_i32 = arith.constant 0 : i32
    %c0_i32_0 = arith.constant 0 : i32
    return %arg0, %c0_i32 : i32, i32
  }
}

</mosaic_0001>

<llo_original>
// kernel: la_mixed_op.1
$region0: #{la_mixed_op.1}
  #allocation0 [shape = 'u32[]', space=smem, size = 0x4, offset = 0x4, fixed_abs, tag = 'smem constant byte address 0x4 - core index']
  #allocation1 [shape = 'u32[144,128]{1,0:T(1,128)}', space=vmem, size = 0x12000, scoped, tag = 'internal scratch']
  %s0 = inlined_call_operand.vmem [shape: f32[200,32], index: 0, kind: input, shape index: {}]
  %s1 = inlined_call_operand.vmem [shape: f32[32,384], index: 1, kind: input, shape index: {}]
  %s2 = inlined_call_operand.vmem [shape: f32[1,384], index: 2, kind: input, shape index: {}]
  %s3 = inlined_call_operand.vmem [shape: f32[1,384], index: 3, kind: input, shape index: {}]
  %s4 = inlined_call_operand.vmem [shape: f32[200,128], index: 4, kind: output, shape index: {}]
  %s5 = sld [smem:[#allocation0]]
  $region26: #{la_mixed_op.1} parent=0
    _
  %s7 = ssub.s32 1, %s5
  %s8 = scalar_select 0, %s7, %s5
  // Predicated region
  $region2: #{la_mixed_op.1} parent=0 // pred_check
    _
  $region3: #{la_mixed_op.1} parent=0 // pred_check_branch
    %10 = sbr.rel (0) target = $region5
  $region4: #{la_mixed_op.1} parent=0 // pred_region
    _
  $region5: #{la_mixed_op.1} parent=0 // pred_fallthru
    _
  // Predicated region
  $region6: #{la_mixed_op.1} parent=0 // pred_check
    _
  $region7: #{la_mixed_op.1} parent=0 // pred_check_branch
    %12 = sbr.rel (0) target = $region9
  $region8: #{la_mixed_op.1} parent=0 // pred_region
    _
  $region9: #{la_mixed_op.1} parent=0 // pred_fallthru
    _
  // Predicated region
  $region10: #{la_mixed_op.1} parent=0 // pred_check
    _
  $region11: #{la_mixed_op.1} parent=0 // pred_check_branch
    %14 = sbr.rel (0) target = $region13
  $region12: #{la_mixed_op.1} parent=0 // pred_region
    _
  $region13: #{la_mixed_op.1} parent=0 // pred_fallthru
    _
  // Predicated region
  $region14: #{la_mixed_op.1} parent=0 // pred_check
    _
  $region15: #{la_mixed_op.1} parent=0 // pred_check_branch
    %16 = sbr.rel (0) target = $region17
  $region16: #{la_mixed_op.1} parent=0 // pred_region
    _
  $region17: #{la_mixed_op.1} parent=0 // pred_fallthru
    _
  %v17 = vld [vmem:[%s0] sm:$0xff]
  %v18 = vld [vmem:[%s0 + $0x8] sm:$0xff]
  %v19 = vld [vmem:[%s0 + $0x10] sm:$0xff]
  %v20 = vld [vmem:[%s0 + $0x18] sm:$0xff]
  %v21 = vld [vmem:[%s0 + $0x20] sm:$0xff]
  %v22 = vld [vmem:[%s0 + $0x28] sm:$0xff]
  %v23 = vld [vmem:[%s0 + $0x30] sm:$0xff]
  %v24 = vld [vmem:[%s0 + $0x38] sm:$0xff]
  %v25 = vld [vmem:[%s0 + $0x40] sm:$0xff]
  %v26 = vld [vmem:[%s0 + $0x48] sm:$0xff]
  %v27 = vld [vmem:[%s0 + $0x50] sm:$0xff]
  %v28 = vld [vmem:[%s0 + $0x58] sm:$0xff]
  %v29 = vld [vmem:[%s0 + $0x60] sm:$0xff]
  %v30 = vld [vmem:[%s0 + $0x68] sm:$0xff]
  %v31 = vld [vmem:[%s0 + $0x70] sm:$0xff]
  %v32 = vld [vmem:[%s0 + $0x78] sm:$0xff]
  %v33 = vld [vmem:[%s0 + $0x80] sm:$0xff]
  %v34 = vld [vmem:[%s0 + $0x88] sm:$0xff]
  %v35 = vld [vmem:[%s0 + $0x90] sm:$0xff]
  %v36 = vld [vmem:[%s0 + $0x98] sm:$0xff]
  %v37 = vld [vmem:[%s0 + $0xa0] sm:$0xff]
  %v38 = vld [vmem:[%s0 + $0xa8] sm:$0xff]
  %v39 = vld [vmem:[%s0 + $0xb0] sm:$0xff]
  %v40 = vld [vmem:[%s0 + $0xb8] sm:$0xff]
  %v41 = vld [vmem:[%s0 + $0xc0] sm:$0xff]
  %v42 = vld [vmem:[%s1] sm:$0xff]
  %v43 = vld [vmem:[%s1 + $0x8] sm:$0xff]
  %v44 = vld [vmem:[%s1 + $0x10] sm:$0xff]
  %v45 = vld [vmem:[%s1 + $0x18] sm:$0xff]
  %v46 = vld [vmem:[%s1 + $0x20] sm:$0xff]
  %v47 = vld [vmem:[%s1 + $0x28] sm:$0xff]
  %v48 = vld [vmem:[%s1 + $0x30] sm:$0xff]
  %v49 = vld [vmem:[%s1 + $0x38] sm:$0xff]
  %v50 = vld [vmem:[%s1 + $0x40] sm:$0xff]
  %v51 = vld [vmem:[%s1 + $0x48] sm:$0xff]
  %v52 = vld [vmem:[%s1 + $0x50] sm:$0xff]
  %v53 = vld [vmem:[%s1 + $0x58] sm:$0xff]
  %v54 = vld [vmem:[%s2] sm:$0x7]
  %v56 = vlaneseq
  %v57 = vshrl.u32 %v56, 7
  %v58 = vsub.s32 0, %v57
  %v59 = vrot.slane %v54, %v58
  %v60 = vlaneseq
  %v61 = vshrl.u32 %v60, 7
  %v62 = vsub.s32 1, %v61
  %v63 = vrot.slane %v54, %v62
  %v64 = vlaneseq
  %v65 = vshrl.u32 %v64, 7
  %v66 = vsub.s32 2, %v65
  %v67 = vrot.slane %v54, %v66
  %vm71 = vcmask 261120
  %v73 = vsel %vm71, %v17, 0
  %v76 = vsel %vm71, %v18, 0
  %v79 = vsel %vm71, %v19, 0
  %v82 = vsel %vm71, %v20, 0
  %v85 = vsel %vm71, %v21, 0
  %v88 = vsel %vm71, %v22, 0
  %v91 = vsel %vm71, %v23, 0
  %v94 = vsel %vm71, %v24, 0
  %v97 = vsel %vm71, %v25, 0
  %v100 = vsel %vm71, %v26, 0
  %v103 = vsel %vm71, %v27, 0
  %v106 = vsel %vm71, %v28, 0
  %v109 = vsel %vm71, %v29, 0
  %v112 = vsel %vm71, %v30, 0
  %v115 = vsel %vm71, %v31, 0
  %v118 = vsel %vm71, %v32, 0
  %v121 = vsel %vm71, %v33, 0
  %v124 = vsel %vm71, %v34, 0
  %v127 = vsel %vm71, %v35, 0
  %v130 = vsel %vm71, %v36, 0
  %v133 = vsel %vm71, %v37, 0
  %v136 = vsel %vm71, %v38, 0
  %v139 = vsel %vm71, %v39, 0
  %v142 = vsel %vm71, %v40, 0
  %v145 = vsel %vm71, %v41, 0
  %147 = vmatprep.subr.mxu0 %v43
  %148 = vmatpush1.msra.mxu0 %v42
  %149 = vmatprep.subr.mxu0 %v46
  %150 = vmatpush1.msra.mxu0 %v45
  %151 = vmatprep.subr.mxu0 %v49
  %152 = vmatpush1.msra.mxu0 %v48
  %153 = vmatprep.subr.mxu0 %v52
  %154 = vmatpush1.msra.mxu0 %v51
  %155 = vmatprep.subr.mxu0 0.0
  %156 = vmatpush1.msra.mxu0 0.0
  %157 = vmatprep.subr.mxu0 0.0
  %158 = vmatpush1.msra.mxu0 0.0
  %159 = vmatprep.subr.mxu0 0.0
  %160 = vmatpush1.msra.mxu0 0.0
  %161 = vmatprep.subr.mxu0 0.0
  %162 = vmatpush1.msra.mxu0 0.0
  %163 = vmatprep.subr.mxu0 0.0
  %164 = vmatpush1.msra.mxu0 0.0
  %165 = vmatprep.subr.mxu0 0.0
  %166 = vmatpush1.msra.mxu0 0.0
  %167 = vmatprep.subr.mxu0 0.0
  %168 = vmatpush1.msra.mxu0 0.0
  %169 = vmatprep.subr.mxu0 0.0
  %170 = vmatpush1.msra.mxu0 0.0
  %171 = vmatprep.subr.mxu0 0.0
  %172 = vmatpush1.msra.mxu0 0.0
  %173 = vmatprep.subr.mxu0 0.0
  %174 = vmatpush1.msra.mxu0 0.0
  %175 = vmatprep.subr.mxu0 0.0
  %176 = vmatpush1.msra.mxu0 0.0
  %177 = vmatprep.subr.mxu0 0.0
  %178 = vmatpush1.msra.mxu0 0.0
  %179 = vmatprep.subr.mxu0 0.0
  %180 = vmatpush1.msra.mxu0 0.0
  %181 = vmatprep.subr.mxu0 0.0
  %182 = vmatpush1.msra.mxu0 0.0
  %183 = vmatprep.subr.mxu0 0.0
  %184 = vmatpush1.msra.mxu0 0.0
  %185 = vmatprep.subr.mxu0 0.0
  %186 = vmatpush1.msra.mxu0 0.0
  %187 = vmatprep.subr.mxu0 0.0
  %188 = vmatpush1.msra.mxu0 0.0
  %189 = vmatprep.subr.mxu0 0.0
  %190 = vmatpush1.msra.mxu0 0.0
  %191 = vmatprep.subr.mxu0 0.0
  %192 = vmatpush1.msra.mxu0 0.0
  %193 = vmatprep.subr.mxu0 0.0
  %194 = vmatpush1.msra.mxu0 0.0
  %195 = vmatprep.subr.mxu0 0.0
  %196 = vmatpush1.msra.mxu0 0.0
  %197 = vmatprep.subr.mxu0 0.0
  %198 = vmatpush1.msra.mxu0 0.0
  %199 = vmatprep.subr.mxu0 0.0
  %200 = vmatpush1.msra.mxu0 0.0
  %201 = vmatprep.subr.mxu0 0.0
  %202 = vmatpush1.msra.mxu0 0.0
  %203 = vmatprep.subr.mxu0 0.0
  %204 = vmatpush1.msra.mxu0 0.0
  %205 = vmatprep.subr.mxu0 0.0
  %206 = vmatpush1.msra.mxu0 0.0
  %207 = vmatprep.subr.mxu0 0.0
  %208 = vmatpush1.msra.mxu0 0.0
  %209 = vmatprep.subr.mxu0 0.0
  %210 = vmatpush1.msra.mxu0 0.0
  %211 = vmatprep.mubr.f32.mxu0 0.0
  %212 = vmatmul.mubr.f32.gmra.mrb[0].mxu0 %v73
  %v213 = vpop.f32.mrb[0].mxu0
  %v214 = vadd.f32 %v59, %v213
  %v215 = vpop.f32.mrb[0].mxu0
  %v216 = vadd.f32 %v63, %v215
  %217 = vmatprep.mubr.f32.mxu0 0.0
  %218 = vmatmul.mubr.f32.gmra.mrb[0].mxu0 %v76
  %v219 = vpop.f32.mrb[0].mxu0
  %v220 = vadd.f32 %v59, %v219
  %v221 = vpop.f32.mrb[0].mxu0
  %v222 = vadd.f32 %v63, %v221
  %223 = vmatprep.mubr.f32.mxu0 0.0
  %224 = vmatmul.mubr.f32.gmra.mrb[0].mxu0 %v79
  %v225 = vpop.f32.mrb[0].mxu0
  %v226 = vadd.f32 %v59, %v225
  %v227 = vpop.f32.mrb[0].mxu0
  %v228 = vadd.f32 %v63, %v227
  %229 = vmatprep.mubr.f32.mxu0 0.0
  %230 = vmatmul.mubr.f32.gmra.mrb[0].mxu0 %v82
  %v231 = vpop.f32.mrb[0].mxu0
  %v232 = vadd.f32 %v59, %v231
  %v233 = vpop.f32.mrb[0].mxu0
  %v234 = vadd.f32 %v63, %v233
  %235 = vmatprep.mubr.f32.mxu0 0.0
  %236 = vmatmul.mubr.f32.gmra.mrb[0].mxu0 %v85
  %v237 = vpop.f32.mrb[0].mxu0
  %v238 = vadd.f32 %v59, %v237
  %v239 = vpop.f32.mrb[0].mxu0
  %v240 = vadd.f32 %v63, %v239
  %241 = vmatprep.mubr.f32.mxu0 0.0
  %242 = vmatmul.mubr.f32.gmra.mrb[0].mxu0 %v88
  %v243 = vpop.f32.mrb[0].mxu0
  %v244 = vadd.f32 %v59, %v243
  %v245 = vpop.f32.mrb[0].mxu0
  %v246 = vadd.f32 %v63, %v245
  %247 = vmatprep.mubr.f32.mxu0 0.0
  %248 = vmatmul.mubr.f32.gmra.mrb[0].mxu0 %v91
  %v249 = vpop.f32.mrb[0].mxu0
  %v250 = vadd.f32 %v59, %v249
  %v251 = vpop.f32.mrb[0].mxu0
  %v252 = vadd.f32 %v63, %v251
  %253 = vmatprep.mubr.f32.mxu0 0.0
  %254 = vmatmul.mubr.f32.gmra.mrb[0].mxu0 %v94
  %v255 = vpop.f32.mrb[0].mxu0
  %v256 = vadd.f32 %v59, %v255
  %v257 = vpop.f32.mrb[0].mxu0
  %v258 = vadd.f32 %v63, %v257
  %259 = vmatprep.mubr.f32.mxu0 0.0
  %260 = vmatmul.mubr.f32.gmra.mrb[0].mxu0 %v97
  %v261 = vpop.f32.mrb[0].mxu0
  %v262 = vadd.f32 %v59, %v261
  %v263 = vpop.f32.mrb[0].mxu0
  %v264 = vadd.f32 %v63, %v263
  %265 = vmatprep.mubr.f32.mxu0 0.0
  %266 = vmatmul.mubr.f32.gmra.mrb[0].mxu0 %v100
  %v267 = vpop.f32.mrb[0].mxu0
  %v268 = vadd.f32 %v59, %v267
  %v269 = vpop.f32.mrb[0].mxu0
  %v270 = vadd.f32 %v63, %v269
  %271 = vmatprep.mubr.f32.mxu0 0.0
  %272 = vmatmul.mubr.f32.gmra.mrb[0].mxu0 %v103
  %v273 = vpop.f32.mrb[0].mxu0
  %v274 = vadd.f32 %v59, %v273
  %v275 = vpop.f32.mrb[0].mxu0
  %v276 = vadd.f32 %v63, %v275
  %277 = vmatprep.mubr.f32.mxu0 0.0
  %278 = vmatmul.mubr.f32.gmra.mrb[0].mxu0 %v106
  %v279 = vpop.f32.mrb[0].mxu0
  %v280 = vadd.f32 %v59, %v279
  %v281 = vpop.f32.mrb[0].mxu0
  %v282 = vadd.f32 %v63, %v281
  %283 = vmatprep.mubr.f32.mxu0 0.0
  %284 = vmatmul.mubr.f32.gmra.mrb[0].mxu0 %v109
  %v285 = vpop.f32.mrb[0].mxu0
  %v286 = vadd.f32 %v59, %v285
  %v287 = vpop.f32.mrb[0].mxu0
  %v288 = vadd.f32 %v63, %v287
  %289 = vmatprep.mubr.f32.mxu0 0.0
  %290 = vmatmul.mubr.f32.gmra.mrb[0].mxu0 %v112
  %v291 = vpop.f32.mrb[0].mxu0
  %v292 = vadd.f32 %v59, %v291
  %v293 = vpop.f32.mrb[0].mxu0
  %v294 = vadd.f32 %v63, %v293
  %295 = vmatprep.mubr.f32.mxu0 0.0
  %296 = vmatmul.mubr.f32.gmra.mrb[0].mxu0 %v115
  %v297 = vpop.f32.mrb[0].mxu0
  %v298 = vadd.f32 %v59, %v297
  %v299 = vpop.f32.mrb[0].mxu0
  %v300 = vadd.f32 %v63, %v299
  %301 = vmatprep.mubr.f32.mxu0 0.0
  %302 = vmatmul.mubr.f32.gmra.mrb[0].mxu0 %v118
  %v303 = vpop.f32.mrb[0].mxu0
  %v304 = vadd.f32 %v59, %v303
  %v305 = vpop.f32.mrb[0].mxu0
  %v306 = vadd.f32 %v63, %v305
  %307 = vmatprep.mubr.f32.mxu0 0.0
  %308 = vmatmul.mubr.f32.gmra.mrb[0].mxu0 %v121
  %v309 = vpop.f32.mrb[0].mxu0
  %v310 = vadd.f32 %v59, %v309
  %v311 = vpop.f32.mrb[0].mxu0
  %v312 = vadd.f32 %v63, %v311
  %313 = vmatprep.mubr.f32.mxu0 0.0
  %314 = vmatmul.mubr.f32.gmra.mrb[0].mxu0 %v124
  %v315 = vpop.f32.mrb[0].mxu0
  %v316 = vadd.f32 %v59, %v315
  %v317 = vpop.f32.mrb[0].mxu0
  %v318 = vadd.f32 %v63, %v317
  %319 = vmatprep.mubr.f32.mxu0 0.0
  %320 = vmatmul.mubr.f32.gmra.mrb[0].mxu0 %v127
  %v321 = vpop.f32.mrb[0].mxu0
  %v322 = vadd.f32 %v59, %v321
  %v323 = vpop.f32.mrb[0].mxu0
  %v324 = vadd.f32 %v63, %v323
  %325 = vmatprep.mubr.f32.mxu0 0.0
  %326 = vmatmul.mubr.f32.gmra.mrb[0].mxu0 %v130
  %v327 = vpop.f32.mrb[0].mxu0
  %v328 = vadd.f32 %v59, %v327
  %v329 = vpop.f32.mrb[0].mxu0
  %v330 = vadd.f32 %v63, %v329
  %331 = vmatprep.mubr.f32.mxu0 0.0
  %332 = vmatmul.mubr.f32.gmra.mrb[0].mxu0 %v133
  %v333 = vpop.f32.mrb[0].mxu0
  %v334 = vadd.f32 %v59, %v333
  %v335 = vpop.f32.mrb[0].mxu0
  %v336 = vadd.f32 %v63, %v335
  %337 = vmatprep.mubr.f32.mxu0 0.0
  %338 = vmatmul.mubr.f32.gmra.mrb[0].mxu0 %v136
  %v339 = vpop.f32.mrb[0].mxu0
  %v340 = vadd.f32 %v59, %v339
  %v341 = vpop.f32.mrb[0].mxu0
  %v342 = vadd.f32 %v63, %v341
  %343 = vmatprep.mubr.f32.mxu0 0.0
  %344 = vmatmul.mubr.f32.gmra.mrb[0].mxu0 %v139
  %v345 = vpop.f32.mrb[0].mxu0
  %v346 = vadd.f32 %v59, %v345
  %v347 = vpop.f32.mrb[0].mxu0
  %v348 = vadd.f32 %v63, %v347
  %349 = vmatprep.mubr.f32.mxu0 0.0
  %350 = vmatmul.mubr.f32.gmra.mrb[0].mxu0 %v142
  %v351 = vpop.f32.mrb[0].mxu0
  %v352 = vadd.f32 %v59, %v351
  %v353 = vpop.f32.mrb[0].mxu0
  %v354 = vadd.f32 %v63, %v353
  %355 = vmatprep.mubr.f32.mxu0 0.0
  %356 = vmatmul.mubr.f32.gmra.mrb[0].mxu0 %v145
  %v357 = vpop.f32.mrb[0].mxu0
  %v358 = vadd.f32 %v59, %v357
  %v359 = vpop.f32.mrb[0].mxu0
  %v360 = vadd.f32 %v63, %v359
  %361 = vdwg.mxu0
  %362 = vmatprep.subr.mxu0 0.0
  %363 = vmatpush1.msra.mxu0 %v44
  %364 = vmatprep.subr.mxu0 0.0
  %365 = vmatpush1.msra.mxu0 %v47
  %366 = vmatprep.subr.mxu0 0.0
  %367 = vmatpush1.msra.mxu0 %v50
  %368 = vmatprep.subr.mxu0 0.0
  %369 = vmatpush1.msra.mxu0 %v53
  %370 = vmatprep.subr.mxu0 0.0
  %371 = vmatpush1.msra.mxu0 0.0
  %372 = vmatprep.subr.mxu0 0.0
  %373 = vmatpush1.msra.mxu0 0.0
  %374 = vmatprep.subr.mxu0 0.0
  %375 = vmatpush1.msra.mxu0 0.0
  %376 = vmatprep.subr.mxu0 0.0
  %377 = vmatpush1.msra.mxu0 0.0
  %378 = vmatprep.subr.mxu0 0.0
  %379 = vmatpush1.msra.mxu0 0.0
  %380 = vmatprep.subr.mxu0 0.0
  %381 = vmatpush1.msra.mxu0 0.0
  %382 = vmatprep.subr.mxu0 0.0
  %383 = vmatpush1.msra.mxu0 0.0
  %384 = vmatprep.subr.mxu0 0.0
  %385 = vmatpush1.msra.mxu0 0.0
  %386 = vmatprep.subr.mxu0 0.0
  %387 = vmatpush1.msra.mxu0 0.0
  %388 = vmatprep.subr.mxu0 0.0
  %389 = vmatpush1.msra.mxu0 0.0
  %390 = vmatprep.subr.mxu0 0.0
  %391 = vmatpush1.msra.mxu0 0.0
  %392 = vmatprep.subr.mxu0 0.0
  %393 = vmatpush1.msra.mxu0 0.0
  %394 = vmatprep.subr.mxu0 0.0
  %395 = vmatpush1.msra.mxu0 0.0
  %396 = vmatprep.subr.mxu0 0.0
  %397 = vmatpush1.msra.mxu0 0.0
  %398 = vmatprep.subr.mxu0 0.0
  %399 = vmatpush1.msra.mxu0 0.0
  %400 = vmatprep.subr.mxu0 0.0
  %401 = vmatpush1.msra.mxu0 0.0
  %402 = vmatprep.subr.mxu0 0.0
  %403 = vmatpush1.msra.mxu0 0.0
  %404 = vmatprep.subr.mxu0 0.0
  %405 = vmatpush1.msra.mxu0 0.0
  %406 = vmatprep.subr.mxu0 0.0
  %407 = vmatpush1.msra.mxu0 0.0
  %408 = vmatprep.subr.mxu0 0.0
  %409 = vmatpush1.msra.mxu0 0.0
  %410 = vmatprep.subr.mxu0 0.0
  %411 = vmatpush1.msra.mxu0 0.0
  %412 = vmatprep.subr.mxu0 0.0
  %413 = vmatpush1.msra.mxu0 0.0
  %414 = vmatprep.subr.mxu0 0.0
  %415 = vmatpush1.msra.mxu0 0.0
  %416 = vmatprep.subr.mxu0 0.0
  %417 = vmatpush1.msra.mxu0 0.0
  %418 = vmatprep.subr.mxu0 0.0
  %419 = vmatpush1.msra.mxu0 0.0
  %420 = vmatprep.subr.mxu0 0.0
  %421 = vmatpush1.msra.mxu0 0.0
  %422 = vmatprep.subr.mxu0 0.0
  %423 = vmatpush1.msra.mxu0 0.0
  %424 = vmatprep.subr.mxu0 0.0
  %425 = vmatpush1.msra.mxu0 0.0
  %426 = vmatprep.mubr.f32.mxu0 0.0
  %427 = vmatmul.mubr.f32.gmra.mrb[0].mxu0 %v73
  %v428 = vpop.f32.mrb[0].mxu0
  %v429 = vadd.f32 %v67, %v428
  %v430 = vpop.f32.mrb[0].mxu0
  %431 = vmatprep.mubr.f32.mxu0 0.0
  %432 = vmatmul.mubr.f32.gmra.mrb[0].mxu0 %v76
  %v433 = vpop.f32.mrb[0].mxu0
  %v434 = vadd.f32 %v67, %v433
  %v435 = vpop.f32.mrb[0].mxu0
  %436 = vmatprep.mubr.f32.mxu0 0.0
  %437 = vmatmul.mubr.f32.gmra.mrb[0].mxu0 %v79
  %v438 = vpop.f32.mrb[0].mxu0
  %v439 = vadd.f32 %v67, %v438
  %v440 = vpop.f32.mrb[0].mxu0
  %441 = vmatprep.mubr.f32.mxu0 0.0
  %442 = vmatmul.mubr.f32.gmra.mrb[0].mxu0 %v82
  %v443 = vpop.f32.mrb[0].mxu0
  %v444 = vadd.f32 %v67, %v443
  %v445 = vpop.f32.mrb[0].mxu0
  %446 = vmatprep.mubr.f32.mxu0 0.0
  %447 = vmatmul.mubr.f32.gmra.mrb[0].mxu0 %v85
  %v448 = vpop.f32.mrb[0].mxu0
  %v449 = vadd.f32 %v67, %v448
  %v450 = vpop.f32.mrb[0].mxu0
  %451 = vmatprep.mubr.f32.mxu0 0.0
  %452 = vmatmul.mubr.f32.gmra.mrb[0].mxu0 %v88
  %v453 = vpop.f32.mrb[0].mxu0
  %v454 = vadd.f32 %v67, %v453
  %v455 = vpop.f32.mrb[0].mxu0
  %456 = vmatprep.mubr.f32.mxu0 0.0
  %457 = vmatmul.mubr.f32.gmra.mrb[0].mxu0 %v91
  %v458 = vpop.f32.mrb[0].mxu0
  %v459 = vadd.f32 %v67, %v458
  %v460 = vpop.f32.mrb[0].mxu0
  %461 = vmatprep.mubr.f32.mxu0 0.0
  %462 = vmatmul.mubr.f32.gmra.mrb[0].mxu0 %v94
  %v463 = vpop.f32.mrb[0].mxu0
  %v464 = vadd.f32 %v67, %v463
  %v465 = vpop.f32.mrb[0].mxu0
  %466 = vmatprep.mubr.f32.mxu0 0.0
  %467 = vmatmul.mubr.f32.gmra.mrb[0].mxu0 %v97
  %v468 = vpop.f32.mrb[0].mxu0
  %v469 = vadd.f32 %v67, %v468
  %v470 = vpop.f32.mrb[0].mxu0
  %471 = vmatprep.mubr.f32.mxu0 0.0
  %472 = vmatmul.mubr.f32.gmra.mrb[0].mxu0 %v100
  %v473 = vpop.f32.mrb[0].mxu0
  %v474 = vadd.f32 %v67, %v473
  %v475 = vpop.f32.mrb[0].mxu0
  %476 = vmatprep.mubr.f32.mxu0 0.0
  %477 = vmatmul.mubr.f32.gmra.mrb[0].mxu0 %v103
  %v478 = vpop.f32.mrb[0].mxu0
  %v479 = vadd.f32 %v67, %v478
  %v480 = vpop.f32.mrb[0].mxu0
  %481 = vmatprep.mubr.f32.mxu0 0.0
  %482 = vmatmul.mubr.f32.gmra.mrb[0].mxu0 %v106
  %v483 = vpop.f32.mrb[0].mxu0
  %v484 = vadd.f32 %v67, %v483
  %v485 = vpop.f32.mrb[0].mxu0
  %486 = vmatprep.mubr.f32.mxu0 0.0
  %487 = vmatmul.mubr.f32.gmra.mrb[0].mxu0 %v109
  %v488 = vpop.f32.mrb[0].mxu0
  %v489 = vadd.f32 %v67, %v488
  %v490 = vpop.f32.mrb[0].mxu0
  %491 = vmatprep.mubr.f32.mxu0 0.0
  %492 = vmatmul.mubr.f32.gmra.mrb[0].mxu0 %v112
  %v493 = vpop.f32.mrb[0].mxu0
  %v494 = vadd.f32 %v67, %v493
  %v495 = vpop.f32.mrb[0].mxu0
  %496 = vmatprep.mubr.f32.mxu0 0.0
  %497 = vmatmul.mubr.f32.gmra.mrb[0].mxu0 %v115
  %v498 = vpop.f32.mrb[0].mxu0
  %v499 = vadd.f32 %v67, %v498
  %v500 = vpop.f32.mrb[0].mxu0
  %501 = vmatprep.mubr.f32.mxu0 0.0
  %502 = vmatmul.mubr.f32.gmra.mrb[0].mxu0 %v118
  %v503 = vpop.f32.mrb[0].mxu0
  %v504 = vadd.f32 %v67, %v503
  %v505 = vpop.f32.mrb[0].mxu0
  %506 = vmatprep.mubr.f32.mxu0 0.0
  %507 = vmatmul.mubr.f32.gmra.mrb[0].mxu0 %v121
  %v508 = vpop.f32.mrb[0].mxu0
  %v509 = vadd.f32 %v67, %v508
  %v510 = vpop.f32.mrb[0].mxu0
  %511 = vmatprep.mubr.f32.mxu0 0.0
  %512 = vmatmul.mubr.f32.gmra.mrb[0].mxu0 %v124
  %v513 = vpop.f32.mrb[0].mxu0
  %v514 = vadd.f32 %v67, %v513
  %v515 = vpop.f32.mrb[0].mxu0
  %516 = vmatprep.mubr.f32.mxu0 0.0
  %517 = vmatmul.mubr.f32.gmra.mrb[0].mxu0 %v127
  %v518 = vpop.f32.mrb[0].mxu0
  %v519 = vadd.f32 %v67, %v518
  %v520 = vpop.f32.mrb[0].mxu0
  %521 = vmatprep.mubr.f32.mxu0 0.0
  %522 = vmatmul.mubr.f32.gmra.mrb[0].mxu0 %v130
  %v523 = vpop.f32.mrb[0].mxu0
  %v524 = vadd.f32 %v67, %v523
  %v525 = vpop.f32.mrb[0].mxu0
  %526 = vmatprep.mubr.f32.mxu0 0.0
  %527 = vmatmul.mubr.f32.gmra.mrb[0].mxu0 %v133
  %v528 = vpop.f32.mrb[0].mxu0
  %v529 = vadd.f32 %v67, %v528
  %v530 = vpop.f32.mrb[0].mxu0
  %531 = vmatprep.mubr.f32.mxu0 0.0
  %532 = vmatmul.mubr.f32.gmra.mrb[0].mxu0 %v136
  %v533 = vpop.f32.mrb[0].mxu0
  %v534 = vadd.f32 %v67, %v533
  %v535 = vpop.f32.mrb[0].mxu0
  %536 = vmatprep.mubr.f32.mxu0 0.0
  %537 = vmatmul.mubr.f32.gmra.mrb[0].mxu0 %v139
  %v538 = vpop.f32.mrb[0].mxu0
  %v539 = vadd.f32 %v67, %v538
  %v540 = vpop.f32.mrb[0].mxu0
  %541 = vmatprep.mubr.f32.mxu0 0.0
  %542 = vmatmul.mubr.f32.gmra.mrb[0].mxu0 %v142
  %v543 = vpop.f32.mrb[0].mxu0
  %v544 = vadd.f32 %v67, %v543
  %v545 = vpop.f32.mrb[0].mxu0
  %546 = vmatprep.mubr.f32.mxu0 0.0
  %547 = vmatmul.mubr.f32.gmra.mrb[0].mxu0 %v145
  %v548 = vpop.f32.mrb[0].mxu0
  %v549 = vadd.f32 %v67, %v548
  %v550 = vpop.f32.mrb[0].mxu0
  %551 = vdwg.mxu0
  %v552 = vmax.f32 %v214, 0.0
  %v553 = vmax.f32 %v216, 0.0
  %v554 = vmax.f32 %v429, 0.0
  %v555 = vmax.f32 %v220, 0.0
  %v556 = vmax.f32 %v222, 0.0
  %v557 = vmax.f32 %v434, 0.0
  %v558 = vmax.f32 %v226, 0.0
  %v559 = vmax.f32 %v228, 0.0
  %v560 = vmax.f32 %v439, 0.0
  %v561 = vmax.f32 %v232, 0.0
  %v562 = vmax.f32 %v234, 0.0
  %v563 = vmax.f32 %v444, 0.0
  %v564 = vmax.f32 %v238, 0.0
  %v565 = vmax.f32 %v240, 0.0
  %v566 = vmax.f32 %v449, 0.0
  %v567 = vmax.f32 %v244, 0.0
  %v568 = vmax.f32 %v246, 0.0
  %v569 = vmax.f32 %v454, 0.0
  %v570 = vmax.f32 %v250, 0.0
  %v571 = vmax.f32 %v252, 0.0
  %v572 = vmax.f32 %v459, 0.0
  %v573 = vmax.f32 %v256, 0.0
  %v574 = vmax.f32 %v258, 0.0
  %v575 = vmax.f32 %v464, 0.0
  %v576 = vmax.f32 %v262, 0.0
  %v577 = vmax.f32 %v264, 0.0
  %v578 = vmax.f32 %v469, 0.0
  %v579 = vmax.f32 %v268, 0.0
  %v580 = vmax.f32 %v270, 0.0
  %v581 = vmax.f32 %v474, 0.0
  %v582 = vmax.f32 %v274, 0.0
  %v583 = vmax.f32 %v276, 0.0
  %v584 = vmax.f32 %v479, 0.0
  %v585 = vmax.f32 %v280, 0.0
  %v586 = vmax.f32 %v282, 0.0
  %v587 = vmax.f32 %v484, 0.0
  %v588 = vmax.f32 %v286, 0.0
  %v589 = vmax.f32 %v288, 0.0
  %v590 = vmax.f32 %v489, 0.0
  %v591 = vmax.f32 %v292, 0.0
  %v592 = vmax.f32 %v294, 0.0
  %v593 = vmax.f32 %v494, 0.0
  %v594 = vmax.f32 %v298, 0.0
  %v595 = vmax.f32 %v300, 0.0
  %v596 = vmax.f32 %v499, 0.0
  %v597 = vmax.f32 %v304, 0.0
  %v598 = vmax.f32 %v306, 0.0
  %v599 = vmax.f32 %v504, 0.0
  %v600 = vmax.f32 %v310, 0.0
  %v601 = vmax.f32 %v312, 0.0
  %v602 = vmax.f32 %v509, 0.0
  %v603 = vmax.f32 %v316, 0.0
  %v604 = vmax.f32 %v318, 0.0
  %v605 = vmax.f32 %v514, 0.0
  %v606 = vmax.f32 %v322, 0.0
  %v607 = vmax.f32 %v324, 0.0
  %v608 = vmax.f32 %v519, 0.0
  %v609 = vmax.f32 %v328, 0.0
  %v610 = vmax.f32 %v330, 0.0
  %v611 = vmax.f32 %v524, 0.0
  %v612 = vmax.f32 %v334, 0.0
  %v613 = vmax.f32 %v336, 0.0
  %v614 = vmax.f32 %v529, 0.0
  %v615 = vmax.f32 %v340, 0.0
  %v616 = vmax.f32 %v342, 0.0
  %v617 = vmax.f32 %v534, 0.0
  %v618 = vmax.f32 %v346, 0.0
  %v619 = vmax.f32 %v348, 0.0
  %v620 = vmax.f32 %v539, 0.0
  %v621 = vmax.f32 %v352, 0.0
  %v622 = vmax.f32 %v354, 0.0
  %v623 = vmax.f32 %v544, 0.0
  %v624 = vmax.f32 %v358, 0.0
  %v625 = vmax.f32 %v360, 0.0
  %v626 = vmax.f32 %v549, 0.0
  %v627 = vld [vmem:[%s3] sm:$0x7]
  %v629 = vlaneseq
  %v630 = vshrl.u32 %v629, 7
  %v631 = vsub.s32 0, %v630
  %v632 = vrot.slane %v627, %v631
  %v633 = vlaneseq
  %v634 = vshrl.u32 %v633, 7
  %v635 = vsub.s32 1, %v634
  %v636 = vrot.slane %v627, %v635
  %v637 = vlaneseq
  %v638 = vshrl.u32 %v637, 7
  %v639 = vsub.s32 2, %v638
  %v640 = vrot.slane %v627, %v639
  %v644 = vmul.f32 %v552, %v632
  %v645 = vmul.f32 %v553, %v636
  %v646 = vmul.f32 %v554, %v640
  %v647 = vmul.f32 %v555, %v632
  %v648 = vmul.f32 %v556, %v636
  %v649 = vmul.f32 %v557, %v640
  %v650 = vmul.f32 %v558, %v632
  %v651 = vmul.f32 %v559, %v636
  %v652 = vmul.f32 %v560, %v640
  %v653 = vmul.f32 %v561, %v632
  %v654 = vmul.f32 %v562, %v636
  %v655 = vmul.f32 %v563, %v640
  %v656 = vmul.f32 %v564, %v632
  %v657 = vmul.f32 %v565, %v636
  %v658 = vmul.f32 %v566, %v640
  %v659 = vmul.f32 %v567, %v632
  %v660 = vmul.f32 %v568, %v636
  %v661 = vmul.f32 %v569, %v640
  %v662 = vmul.f32 %v570, %v632
  %v663 = vmul.f32 %v571, %v636
  %v664 = vmul.f32 %v572, %v640
  %v665 = vmul.f32 %v573, %v632
  %v666 = vmul.f32 %v574, %v636
  %v667 = vmul.f32 %v575, %v640
  %v668 = vmul.f32 %v576, %v632
  %v669 = vmul.f32 %v577, %v636
  %v670 = vmul.f32 %v578, %v640
  %v671 = vmul.f32 %v579, %v632
  %v672 = vmul.f32 %v580, %v636
  %v673 = vmul.f32 %v581, %v640
  %v674 = vmul.f32 %v582, %v632
  %v675 = vmul.f32 %v583, %v636
  %v676 = vmul.f32 %v584, %v640
  %v677 = vmul.f32 %v585, %v632
  %v678 = vmul.f32 %v586, %v636
  %v679 = vmul.f32 %v587, %v640
  %v680 = vmul.f32 %v588, %v632
  %v681 = vmul.f32 %v589, %v636
  %v682 = vmul.f32 %v590, %v640
  %v683 = vmul.f32 %v591, %v632
  %v684 = vmul.f32 %v592, %v636
  %v685 = vmul.f32 %v593, %v640
  %v686 = vmul.f32 %v594, %v632
  %v687 = vmul.f32 %v595, %v636
  %v688 = vmul.f32 %v596, %v640
  %v689 = vmul.f32 %v597, %v632
  %v690 = vmul.f32 %v598, %v636
  %v691 = vmul.f32 %v599, %v640
  %v692 = vmul.f32 %v600, %v632
  %v693 = vmul.f32 %v601, %v636
  %v694 = vmul.f32 %v602, %v640
  %v695 = vmul.f32 %v603, %v632
  %v696 = vmul.f32 %v604, %v636
  %v697 = vmul.f32 %v605, %v640
  %v698 = vmul.f32 %v606, %v632
  %v699 = vmul.f32 %v607, %v636
  %v700 = vmul.f32 %v608, %v640
  %v701 = vmul.f32 %v609, %v632
  %v702 = vmul.f32 %v610, %v636
  %v703 = vmul.f32 %v611, %v640
  %v704 = vmul.f32 %v612, %v632
  %v705 = vmul.f32 %v613, %v636
  %v706 = vmul.f32 %v614, %v640
  %v707 = vmul.f32 %v615, %v632
  %v708 = vmul.f32 %v616, %v636
  %v709 = vmul.f32 %v617, %v640
  %v710 = vmul.f32 %v618, %v632
  %v711 = vmul.f32 %v619, %v636
  %v712 = vmul.f32 %v620, %v640
  %v713 = vmul.f32 %v621, %v632
  %v714 = vmul.f32 %v622, %v636
  %v715 = vmul.f32 %v623, %v640
  %v716 = vmul.f32 %v624, %v632
  %v717 = vmul.f32 %v625, %v636
  %v718 = vmul.f32 %v626, %v640
  %v719 = vadd.f32 %v644, %v645
  %v720 = vadd.f32 %v647, %v648
  %v721 = vadd.f32 %v650, %v651
  %v722 = vadd.f32 %v653, %v654
  %v723 = vadd.f32 %v656, %v657
  %v724 = vadd.f32 %v659, %v660
  %v725 = vadd.f32 %v662, %v663
  %v726 = vadd.f32 %v665, %v666
  %v727 = vadd.f32 %v668, %v669
  %v728 = vadd.f32 %v671, %v672
  %v729 = vadd.f32 %v674, %v675
  %v730 = vadd.f32 %v677, %v678
  %v731 = vadd.f32 %v680, %v681
  %v732 = vadd.f32 %v683, %v684
  %v733 = vadd.f32 %v686, %v687
  %v734 = vadd.f32 %v689, %v690
  %v735 = vadd.f32 %v692, %v693
  %v736 = vadd.f32 %v695, %v696
  %v737 = vadd.f32 %v698, %v699
  %v738 = vadd.f32 %v701, %v702
  %v739 = vadd.f32 %v704, %v705
  %v740 = vadd.f32 %v707, %v708
  %v741 = vadd.f32 %v710, %v711
  %v742 = vadd.f32 %v713, %v714
  %v743 = vadd.f32 %v716, %v717
  %v744 = vadd.f32 %v719, %v646
  %v745 = vadd.f32 %v720, %v649
  %v746 = vadd.f32 %v721, %v652
  %v747 = vadd.f32 %v722, %v655
  %v748 = vadd.f32 %v723, %v658
  %v749 = vadd.f32 %v724, %v661
  %v750 = vadd.f32 %v725, %v664
  %v751 = vadd.f32 %v726, %v667
  %v752 = vadd.f32 %v727, %v670
  %v753 = vadd.f32 %v728, %v673
  %v754 = vadd.f32 %v729, %v676
  %v755 = vadd.f32 %v730, %v679
  %v756 = vadd.f32 %v731, %v682
  %v757 = vadd.f32 %v732, %v685
  %v758 = vadd.f32 %v733, %v688
  %v759 = vadd.f32 %v734, %v691
  %v760 = vadd.f32 %v735, %v694
  %v761 = vadd.f32 %v736, %v697
  %v762 = vadd.f32 %v737, %v700
  %v763 = vadd.f32 %v738, %v703
  %v764 = vadd.f32 %v739, %v706
  %v765 = vadd.f32 %v740, %v709
  %v766 = vadd.f32 %v741, %v712
  %v767 = vadd.f32 %v742, %v715
  %v768 = vadd.f32 %v743, %v718
  %769 = vst [vmem:[%s4] sm:$0xff] %v744
  %770 = vst [vmem:[%s4 + $0x8] sm:$0xff] %v745
  %771 = vst [vmem:[%s4 + $0x10] sm:$0xff] %v746
  %772 = vst [vmem:[%s4 + $0x18] sm:$0xff] %v747
  %773 = vst [vmem:[%s4 + $0x20] sm:$0xff] %v748
  %774 = vst [vmem:[%s4 + $0x28] sm:$0xff] %v749
  %775 = vst [vmem:[%s4 + $0x30] sm:$0xff] %v750
  %776 = vst [vmem:[%s4 + $0x38] sm:$0xff] %v751
  %777 = vst [vmem:[%s4 + $0x40] sm:$0xff] %v752
  %778 = vst [vmem:[%s4 + $0x48] sm:$0xff] %v753
  %779 = vst [vmem:[%s4 + $0x50] sm:$0xff] %v754
  %780 = vst [vmem:[%s4 + $0x58] sm:$0xff] %v755
  %781 = vst [vmem:[%s4 + $0x60] sm:$0xff] %v756
  %782 = vst [vmem:[%s4 + $0x68] sm:$0xff] %v757
  %783 = vst [vmem:[%s4 + $0x70] sm:$0xff] %v758
  %784 = vst [vmem:[%s4 + $0x78] sm:$0xff] %v759
  %785 = vst [vmem:[%s4 + $0x80] sm:$0xff] %v760
  %786 = vst [vmem:[%s4 + $0x88] sm:$0xff] %v761
  %787 = vst [vmem:[%s4 + $0x90] sm:$0xff] %v762
  %788 = vst [vmem:[%s4 + $0x98] sm:$0xff] %v763
  %789 = vst [vmem:[%s4 + $0xa0] sm:$0xff] %v764
  %790 = vst [vmem:[%s4 + $0xa8] sm:$0xff] %v765
  %791 = vst [vmem:[%s4 + $0xb0] sm:$0xff] %v766
  %792 = vst [vmem:[%s4 + $0xb8] sm:$0xff] %v767
  %793 = vst [vmem:[%s4 + $0xc0] sm:$0xff] %v768
  // Predicated region
  $region18: #{la_mixed_op.1} parent=0 // pred_check
    _
  $region19: #{la_mixed_op.1} parent=0 // pred_check_branch
    %795 = sbr.rel (0) target = $region21
  $region20: #{la_mixed_op.1} parent=0 // pred_region
    _
  $region21: #{la_mixed_op.1} parent=0 // pred_fallthru
    _
  // Predicated region
  $region22: #{la_mixed_op.1} parent=0 // pred_check
    _
  $region23: #{la_mixed_op.1} parent=0 // pred_check_branch
    %797 = sbr.rel (0) target = $region25
  $region24: #{la_mixed_op.1} parent=0 // pred_region
    _
  $region25: #{la_mixed_op.1} parent=0 // pred_fallthru
    _

</llo_original>
